<compile_context>
chip_gen: v6e
topology: v6e:2x2x1
jax: 0.10.0
libtpu: 0.0.40
codegen_flags: <defaults>
</compile_context>

<pallas_src>
import functools

import jax
import jax.numpy as jnp
from jax.experimental import pallas as pl
from jax.experimental.pallas import tpu as pltpu

HIDDEN = 64
_LANE = 128
_SUBLANE = 8


def _round_up(x, m):
    return (x + m - 1) // m * m


@functools.lru_cache(maxsize=None)
def _make_policy_kernel(feature_major_in):
    def kernel(x_ref, w1_ref, b1_ref, w2_ref, b2_ref, w3_ref, b3_ref, o_ref):
        # MXU operand dtype (bf16 or f32); accumulation + elementwise stay f32.
        mxu_dtype = w1_ref.dtype
        # In-kernel cast (VPU), hidden under the input DMA: the wrapper streams
        # the state in its original f32 form (no extra XLA cast pass over HBM).
        x = x_ref[...].astype(mxu_dtype)

        # Layer 1 (feature-major): (HIDDEN, state_dim) @ x^T -> (HIDDEN, tile).
        if feature_major_in:
            # x is (state_dim, tile): plain matmul.
            z1 = jnp.dot(w1_ref[...], x, preferred_element_type=jnp.float32)
        else:
            # x is (tile, state_dim): contract both last dims (rhs-transposed
            # contraction; the relayout rides the XLU slot, free for this
            # HBM-bound kernel).
            z1 = jax.lax.dot_general(
                w1_ref[...], x, (((1,), (1,)), ((), ())),
                preferred_element_type=jnp.float32)
        h1 = jnp.maximum(z1 + b1_ref[...], 0.0)

        # Layer 2: (HIDDEN, HIDDEN) @ (HIDDEN, tile) -> (HIDDEN, tile), ReLU.
        z2 = jnp.dot(w2_ref[...], h1.astype(mxu_dtype),
                     preferred_element_type=jnp.float32)
        h2 = jnp.maximum(z2 + b2_ref[...], 0.0)

        # Layer 3: (action_dim, HIDDEN) @ (HIDDEN, tile) -> (action_dim, tile),
        # Tanh (EUP). Batch stays on the 128-lane axis -> lane-dense stores.
        z3 = jnp.dot(w3_ref[...], h2.astype(mxu_dtype),
                     preferred_element_type=jnp.float32)
        o_ref[...] = jnp.tanh(z3 + b3_ref[...]).astype(o_ref.dtype)

    return kernel


def _batch_tiling(batch, tile_b):
    """Pick (tile, num_tiles, padded_batch).

    Multi-tile runs need the batch tile to be a multiple of 128 because the
    lane-dense output block carries the batch on its last axis; a single tile
    only needs sublane (8) alignment since block shape == (padded) array shape.
    Keep >= 2 tiles whenever the batch allows so both v7x TensorCores get work
    (harmless no-op on single-TC v5e/v6e).
    """
    if batch <= _LANE:
        tile = _round_up(batch, _SUBLANE)
        return tile, 1, tile
    tile = min(_round_up(tile_b, _LANE), _round_up(batch, _LANE))
    num_tiles = pl.cdiv(batch, tile)
    if num_tiles == 1 and batch >= 2 * _LANE:
        tile = _round_up(pl.cdiv(batch, 2), _LANE)
        num_tiles = pl.cdiv(batch, tile)
    return tile, num_tiles, tile * num_tiles


def _reference_forward(state, params):
    """Pure-jnp reference (also the tiny-batch fast path). state: [batch, state_dim]."""
    h = jnp.maximum(state @ params["w1"].T + params["b1"].T, 0.0)
    h = jnp.maximum(h @ params["w2"].T + params["b2"].T, 0.0)
    return jnp.tanh(h @ params["w3"].T + params["b3"].T)


def policy_forward(state, params, *, tile_b=2048, use_bf16=True,
                   state_feature_major=False, feature_major_out=False,
                   small_batch_fallback=True):
    """Forward pass of the Policy MLP.

    state:  [batch, state_dim] f32 (or [state_dim, batch] if state_feature_major).
    params: PyTorch-layout weights w{1,2,3}: [out, in], biases b{1,2,3}: [out, 1].
    Returns [batch, action_dim] (or [action_dim, batch] if feature_major_out).
    """
    if state_feature_major:
        state_dim, batch = state.shape
    else:
        batch, state_dim = state.shape
    action_dim = params["w3"].shape[0]

    # Tiny RL batches: Pallas dispatch + DMA latency dominates; plain XLA wins.
    if small_batch_fallback and batch <= 64:
        x = state.T if state_feature_major else state
        out = _reference_forward(x, params)
        return out.T if feature_major_out else out

    tile, num_tiles, padded_batch = _batch_tiling(batch, tile_b)

    # Pad the batch axis only as far as the tiling requires.
    if state_feature_major:
        if padded_batch != batch:
            state = jnp.pad(state, ((0, 0), (0, padded_batch - batch)))
        x_spec = pl.BlockSpec((state_dim, tile), lambda i: (0, i))
    else:
        if padded_batch != batch:
            state = jnp.pad(state, ((0, padded_batch - batch), (0, 0)))
        x_spec = pl.BlockSpec((tile, state_dim), lambda i: (i, 0))

    # bf16 MXU operands (weights here; the streamed state is cast in-kernel).
    # Biases and all elementwise math stay f32.
    mxu_dtype = jnp.bfloat16 if use_bf16 else jnp.float32
    w1 = params["w1"].astype(mxu_dtype)
    w2 = params["w2"].astype(mxu_dtype)
    w3 = params["w3"].astype(mxu_dtype)
    b1 = params["b1"].astype(jnp.float32)
    b2 = params["b2"].astype(jnp.float32)
    b3 = params["b3"].astype(jnp.float32)

    # Same block index every grid step -> fetched once, kept VMEM-resident.
    def pinned(shape):
        return pl.BlockSpec(shape, lambda i: (0, 0))

    grid_spec = pltpu.PrefetchScalarGridSpec(
        num_scalar_prefetch=0,
        grid=(num_tiles,),
        in_specs=[
            x_spec,                               # streamed state tiles
            pinned((HIDDEN, state_dim)), pinned((HIDDEN, 1)),
            pinned((HIDDEN, HIDDEN)), pinned((HIDDEN, 1)),
            pinned((action_dim, HIDDEN)), pinned((action_dim, 1)),
        ],
        # Feature-major output: batch on the 128-lane axis -> lane-dense stores.
        out_specs=pl.BlockSpec((action_dim, tile), lambda i: (0, i)),
    )

    out_fm = pl.pallas_call(
        _make_policy_kernel(state_feature_major),
        out_shape=jax.ShapeDtypeStruct((action_dim, padded_batch), jnp.float32),
        grid_spec=grid_spec,
        compiler_params=pltpu.CompilerParams(
            # Batch tiles are independent: shard across both TCs on v7x.
            dimension_semantics=("parallel",),
            # Explicit, portable scoped-VMEM budget (fits v5e/v6e/v7x; per-tile
            # footprint at tile=2048 is only a few MiB including double-buffers).
            vmem_limit_bytes=32 * 1024 * 1024,
        ),
    )(state, w1, b1, w2, b2, w3, b3)

    if padded_batch != batch:
        out_fm = out_fm[:, :batch]
    # Transposing back to (batch, action_dim) is wrapper-side layout plumbing;
    # perf-sensitive callers can consume the feature-major form directly.
    return out_fm if feature_major_out else out_fm.T


def init_policy_params(key, state_dim, action_dim):
    """PyTorch nn.Linear-style init (U[-1/sqrt(fan_in), 1/sqrt(fan_in)]).

    Weights in PyTorch layout [out_features, in_features]; biases as [out, 1]."""
    dims = [(state_dim, HIDDEN), (HIDDEN, HIDDEN), (HIDDEN, action_dim)]
    params = {}
    for i, (fan_in, fan_out) in enumerate(dims, start=1):
        key, kw, kb = jax.random.split(key, 3)
        bound = 1.0 / jnp.sqrt(jnp.float32(fan_in))
        params[f"w{i}"] = jax.random.uniform(
            kw, (fan_out, fan_in), jnp.float32, minval=-bound, maxval=bound)
        params[f"b{i}"] = jax.random.uniform(
            kb, (fan_out, 1), jnp.float32, minval=-bound, maxval=bound)
    return params


if __name__ == "__main__":
    state_dim = 16
    action_dim = 4

    key = jax.random.PRNGKey(0)
    key, k_small, k_big = jax.random.split(key, 3)
    params = init_policy_params(key, state_dim, action_dim)

    # 1) Tiny batch (matches the PyTorch RL usage): dispatch-side XLA fallback.
    state_small = jax.random.normal(k_small, (2, state_dim), dtype=jnp.float32)
    out_small = jax.block_until_ready(policy_forward(state_small, params))
    ref_small = _reference_forward(state_small, params)
    assert out_small.shape == (2, action_dim)
    assert jnp.allclose(out_small, ref_small, atol=1e-5, rtol=1e-5)

    # 2) Same tiny batch forced through the Pallas kernel (full-f32 path).
    out_small_k = jax.block_until_ready(
        policy_forward(state_small, params, use_bf16=False,
                       small_batch_fallback=False))
    assert out_small_k.shape == (2, action_dim)
    assert jnp.allclose(out_small_k, ref_small, atol=2e-5, rtol=1e-4)

    # 3) Larger batch: pipelined batch grid (2 lane-dense tiles of 512),
    #    bf16 MXU operands with f32 accumulate + f32 ReLU/tanh epilogue.
    state_big = jax.random.normal(k_big, (1024, state_dim), dtype=jnp.float32)
    out_big = jax.block_until_ready(policy_forward(state_big, params))
    ref_big = _reference_forward(state_big, params)
    assert out_big.shape == (1024, action_dim)
    assert jnp.allclose(out_big, ref_big, atol=5e-2)

    # 4) Fully lane-dense I/O path: feature-major state in, feature-major out.
    out_fm = jax.block_until_ready(
        policy_forward(state_big.T, params, state_feature_major=True,
                       feature_major_out=True))
    assert out_fm.shape == (action_dim, 1024)
    assert jnp.allclose(out_fm.T, ref_big, atol=5e-2)

    print("KERNEL_OK")
</pallas_src>

<mosaic_0001>
module attributes {stable_mosaic.version = 11 : i64} {
  func.func @kernel(%arg0: i32, %arg1: memref<8x16xf32, #tpu.memory_space<vmem>>, %arg2: memref<64x16xf32, #tpu.memory_space<vmem>>, %arg3: memref<64x1xf32, #tpu.memory_space<vmem>>, %arg4: memref<64x64xf32, #tpu.memory_space<vmem>>, %arg5: memref<64x1xf32, #tpu.memory_space<vmem>>, %arg6: memref<4x64xf32, #tpu.memory_space<vmem>>, %arg7: memref<4x1xf32, #tpu.memory_space<vmem>>, %arg8: memref<4x8xf32, #tpu.memory_space<vmem>>) attributes {dimension_semantics = [#tpu.dimension_semantics<parallel>], iteration_bounds = array<i64: 1>, scalar_prefetch = 0 : i64, scratch_operands = 0 : i64, tpu.core_type = #tpu.core_type<tc>, window_params = [{transform_indices = @transform_0, window_bounds = array<i64: 8, 16>}, {pipeline_mode = #tpu.pipeline_mode<synchronous>, transform_indices = @transform_1, window_bounds = array<i64: 64, 16>}, {pipeline_mode = #tpu.pipeline_mode<synchronous>, transform_indices = @transform_2, window_bounds = array<i64: 64, 1>}, {pipeline_mode = #tpu.pipeline_mode<synchronous>, transform_indices = @transform_3, window_bounds = array<i64: 64, 64>}, {pipeline_mode = #tpu.pipeline_mode<synchronous>, transform_indices = @transform_4, window_bounds = array<i64: 64, 1>}, {pipeline_mode = #tpu.pipeline_mode<synchronous>, transform_indices = @transform_5, window_bounds = array<i64: 4, 64>}, {pipeline_mode = #tpu.pipeline_mode<synchronous>, transform_indices = @transform_6, window_bounds = array<i64: 4, 1>}, {transform_indices = @transform_7, window_bounds = array<i64: 4, 8>}]} {
    %c0 = arith.constant 0 : index
    %c0_0 = arith.constant 0 : index
    %0 = vector.load %arg1[%c0, %c0_0] : memref<8x16xf32, #tpu.memory_space<vmem>>, vector<8x16xf32>
    %c0_1 = arith.constant 0 : index
    %c0_2 = arith.constant 0 : index
    %1 = vector.load %arg2[%c0_1, %c0_2] : memref<64x16xf32, #tpu.memory_space<vmem>>, vector<64x16xf32>
    %cst = arith.constant dense<0.000000e+00> : vector<64x8xf32>
    %2 = tpu.matmul %1, %0, %cst {dimension_numbers = #tpu.dot_dimension_numbers<[1], [1], [0], [0], [0, 0, 1, 0], [], []>} : vector<64x16xf32>, vector<8x16xf32>, vector<64x8xf32> -> vector<64x8xf32>
    %c0_3 = arith.constant 0 : index
    %c0_4 = arith.constant 0 : index
    %3 = vector.load %arg3[%c0_3, %c0_4] : memref<64x1xf32, #tpu.memory_space<vmem>>, vector<64x1xf32>
    %4 = vector.broadcast %3 : vector<64x1xf32> to vector<64x8xf32>
    %5 = arith.addf %2, %4 : vector<64x8xf32>
    %cst_5 = arith.constant 0.000000e+00 : f32
    %6 = vector.broadcast %cst_5 : f32 to vector<64x8xf32>
    %7 = arith.maximumf %5, %6 : vector<64x8xf32>
    %c0_6 = arith.constant 0 : index
    %c0_7 = arith.constant 0 : index
    %8 = vector.load %arg4[%c0_6, %c0_7] : memref<64x64xf32, #tpu.memory_space<vmem>>, vector<64x64xf32>
    %cst_8 = arith.constant dense<0.000000e+00> : vector<64x8xf32>
    %9 = tpu.matmul %8, %7, %cst_8 {dimension_numbers = #tpu.dot_dimension_numbers<[1], [0], [0], [1], [0, 0, 1, 1], [], []>} : vector<64x64xf32>, vector<64x8xf32>, vector<64x8xf32> -> vector<64x8xf32>
    %c0_9 = arith.constant 0 : index
    %c0_10 = arith.constant 0 : index
    %10 = vector.load %arg5[%c0_9, %c0_10] : memref<64x1xf32, #tpu.memory_space<vmem>>, vector<64x1xf32>
    %11 = vector.broadcast %10 : vector<64x1xf32> to vector<64x8xf32>
    %12 = arith.addf %9, %11 : vector<64x8xf32>
    %cst_11 = arith.constant 0.000000e+00 : f32
    %13 = vector.broadcast %cst_11 : f32 to vector<64x8xf32>
    %14 = arith.maximumf %12, %13 : vector<64x8xf32>
    %c0_12 = arith.constant 0 : index
    %c0_13 = arith.constant 0 : index
    %15 = vector.load %arg6[%c0_12, %c0_13] : memref<4x64xf32, #tpu.memory_space<vmem>>, vector<4x64xf32>
    %cst_14 = arith.constant dense<0.000000e+00> : vector<4x8xf32>
    %16 = tpu.matmul %15, %14, %cst_14 {dimension_numbers = #tpu.dot_dimension_numbers<[1], [0], [0], [1], [0, 0, 1, 1], [], []>} : vector<4x64xf32>, vector<64x8xf32>, vector<4x8xf32> -> vector<4x8xf32>
    %c0_15 = arith.constant 0 : index
    %c0_16 = arith.constant 0 : index
    %17 = vector.load %arg7[%c0_15, %c0_16] : memref<4x1xf32, #tpu.memory_space<vmem>>, vector<4x1xf32>
    %18 = vector.broadcast %17 : vector<4x1xf32> to vector<4x8xf32>
    %19 = arith.addf %16, %18 : vector<4x8xf32>
    %20 = math.tanh %19 : vector<4x8xf32>
    %c0_17 = arith.constant 0 : index
    %c0_18 = arith.constant 0 : index
    %21 = vector.load %arg8[%c0_17, %c0_18] : memref<4x8xf32, #tpu.memory_space<vmem>>, vector<4x8xf32>
    tpu.vector_store %arg8[%c0_17, %c0_18], %20 {strides = array<i32>} : memref<4x8xf32, #tpu.memory_space<vmem>>, vector<4x8xf32>,
    return
  }
  func.func @transform_0(%arg0: i32) -> (i32, i32) {
    %c0_i32 = arith.constant 0 : i32
    %c0_i32_0 = arith.constant 0 : i32
    return %arg0, %c0_i32 : i32, i32
  }
  func.func @transform_1(%arg0: i32) -> (i32, i32) {
    %c0_i32 = arith.constant 0 : i32
    %c0_i32_0 = arith.constant 0 : i32
    %c0_i32_1 = arith.constant 0 : i32
    return %c0_i32, %c0_i32_0 : i32, i32
  }
  func.func @transform_2(%arg0: i32) -> (i32, i32) {
    %c0_i32 = arith.constant 0 : i32
    %c0_i32_0 = arith.constant 0 : i32
    %c0_i32_1 = arith.constant 0 : i32
    return %c0_i32, %c0_i32_0 : i32, i32
  }
  func.func @transform_3(%arg0: i32) -> (i32, i32) {
    %c0_i32 = arith.constant 0 : i32
    %c0_i32_0 = arith.constant 0 : i32
    %c0_i32_1 = arith.constant 0 : i32
    return %c0_i32, %c0_i32_0 : i32, i32
  }
  func.func @transform_4(%arg0: i32) -> (i32, i32) {
    %c0_i32 = arith.constant 0 : i32
    %c0_i32_0 = arith.constant 0 : i32
    %c0_i32_1 = arith.constant 0 : i32
    return %c0_i32, %c0_i32_0 : i32, i32
  }
  func.func @transform_5(%arg0: i32) -> (i32, i32) {
    %c0_i32 = arith.constant 0 : i32
    %c0_i32_0 = arith.constant 0 : i32
    %c0_i32_1 = arith.constant 0 : i32
    return %c0_i32, %c0_i32_0 : i32, i32
  }
  func.func @transform_6(%arg0: i32) -> (i32, i32) {
    %c0_i32 = arith.constant 0 : i32
    %c0_i32_0 = arith.constant 0 : i32
    %c0_i32_1 = arith.constant 0 : i32
    return %c0_i32, %c0_i32_0 : i32, i32
  }
  func.func @transform_7(%arg0: i32) -> (i32, i32) {
    %c0_i32 = arith.constant 0 : i32
    %c0_i32_0 = arith.constant 0 : i32
    return %c0_i32, %arg0 : i32, i32
  }
}

</mosaic_0001>

<llo_original>
// kernel: tpu_custom_call.1
$region0: #{tpu_custom_call.1}
  #allocation0 [shape = 'u32[]', space=smem, size = 0x4, offset = 0x4, fixed_abs, tag = 'smem constant byte address 0x4 - core index']
  #allocation1 [shape = 'u32[144,128]{1,0:T(1,128)}', space=vmem, size = 0x12000, scoped, tag = 'internal scratch']
  %s0 = inlined_call_operand.vmem [shape: f32[8,16], index: 0, kind: input, shape index: {}]
  %s1 = inlined_call_operand.vmem [shape: f32[64,16], index: 1, kind: input, shape index: {}]
  %s2 = inlined_call_operand.vmem [shape: f32[64,1], index: 2, kind: input, shape index: {}]
  %s3 = inlined_call_operand.vmem [shape: f32[64,64], index: 3, kind: input, shape index: {}]
  %s4 = inlined_call_operand.vmem [shape: f32[64,1], index: 4, kind: input, shape index: {}]
  %s5 = inlined_call_operand.vmem [shape: f32[4,64], index: 5, kind: input, shape index: {}]
  %s6 = inlined_call_operand.vmem [shape: f32[4,1], index: 6, kind: input, shape index: {}]
  %s7 = inlined_call_operand.hbm [shape: f32[4,8], index: 7, kind: output, shape index: {}]
  %s8 = sld [smem:[#allocation0]]
  $region38: #{tpu_custom_call.1} parent=0
    _
  %s10 = ssub.s32 1, %s8
  %s11 = scalar_select 0, %s10, %s8
  $region1: #{tpu_custom_call.1} parent=0
    #allocation2 [shape = 'u8[2048]{0}', space=vmem, size = 0x800, scoped, tag = 'output window, operand 0, single buffered']
    #allocation3 [shape = 's32[1]{0}', space=sflag, size = 0x4, scoped, tag = 'scoped memory for tpu_custom_call.1']
    %12 = vsyncpa [#allocation3], 0
    // Predicated region
    $region2: #{tpu_custom_call.1} parent=1 // pred_check
      _
    $region3: #{tpu_custom_call.1} parent=1 // pred_check_branch
      %14 = sbr.rel (0) target = $region5
    $region4: #{tpu_custom_call.1} parent=1 // pred_region
      _
    $region5: #{tpu_custom_call.1} parent=1 // pred_fallthru
      _
    // Predicated region
    $region6: #{tpu_custom_call.1} parent=1 // pred_check
      _
    $region7: #{tpu_custom_call.1} parent=1 // pred_check_branch
      %16 = sbr.rel (0) target = $region9
    $region8: #{tpu_custom_call.1} parent=1 // pred_region
      _
    $region9: #{tpu_custom_call.1} parent=1 // pred_fallthru
      _
    // Predicated region
    $region10: #{tpu_custom_call.1} parent=1 // pred_check
      _
    $region11: #{tpu_custom_call.1} parent=1 // pred_check_branch
      %18 = sbr.rel (0) target = $region13
    $region12: #{tpu_custom_call.1} parent=1 // pred_region
      _
    $region13: #{tpu_custom_call.1} parent=1 // pred_fallthru
      _
    // Predicated region
    $region14: #{tpu_custom_call.1} parent=1 // pred_check
      _
    $region15: #{tpu_custom_call.1} parent=1 // pred_check_branch
      %20 = sbr.rel (0) target = $region17
    $region16: #{tpu_custom_call.1} parent=1 // pred_region
      _
    $region17: #{tpu_custom_call.1} parent=1 // pred_fallthru
      _
    // Predicated region
    $region18: #{tpu_custom_call.1} parent=1 // pred_check
      _
    $region19: #{tpu_custom_call.1} parent=1 // pred_check_branch
      %22 = sbr.rel (0) target = $region21
    $region20: #{tpu_custom_call.1} parent=1 // pred_region
      _
    $region21: #{tpu_custom_call.1} parent=1 // pred_fallthru
      _
    // Predicated region
    $region22: #{tpu_custom_call.1} parent=1 // pred_check
      _
    $region23: #{tpu_custom_call.1} parent=1 // pred_check_branch
      %24 = sbr.rel (0) target = $region25
    $region24: #{tpu_custom_call.1} parent=1 // pred_region
      _
    $region25: #{tpu_custom_call.1} parent=1 // pred_fallthru
      _
    // Predicated region
    $region26: #{tpu_custom_call.1} parent=1 // pred_check
      _
    $region27: #{tpu_custom_call.1} parent=1 // pred_check_branch
      %26 = sbr.rel (0) target = $region29
    $region28: #{tpu_custom_call.1} parent=1 // pred_region
      _
    $region29: #{tpu_custom_call.1} parent=1 // pred_fallthru
      _
    %v27 = vld [vmem:[%s0] sm:$0xff]
    %v28 = vld [vmem:[%s1] sm:$0xff]
    %v29 = vld [vmem:[%s1 + $0x8] sm:$0xff]
    %v30 = vld [vmem:[%s1 + $0x10] sm:$0xff]
    %v31 = vld [vmem:[%s1 + $0x18] sm:$0xff]
    %v32 = vld [vmem:[%s1 + $0x20] sm:$0xff]
    %v33 = vld [vmem:[%s1 + $0x28] sm:$0xff]
    %v34 = vld [vmem:[%s1 + $0x30] sm:$0xff]
    %v35 = vld [vmem:[%s1 + $0x38] sm:$0xff]
    %v36 = vld [vmem:[%s2] sm:$0xff]
    %v37 = vld [vmem:[%s2 + $0x8] sm:$0xff]
    %v38 = vld [vmem:[%s2 + $0x10] sm:$0xff]
    %v39 = vld [vmem:[%s2 + $0x18] sm:$0xff]
    %v40 = vld [vmem:[%s2 + $0x20] sm:$0xff]
    %v41 = vld [vmem:[%s2 + $0x28] sm:$0xff]
    %v42 = vld [vmem:[%s2 + $0x30] sm:$0xff]
    %v43 = vld [vmem:[%s2 + $0x38] sm:$0xff]
    %45 = vset.pattern.permute.xlu0 0
    %46 = vperm.xlu0 %45, %v36
    %v47 = vpop.permute.xlu0 %46
    %50 = vset.pattern.permute.xlu0 0
    %51 = vperm.xlu0 %50, %v37
    %v52 = vpop.permute.xlu0 %51
    %55 = vset.pattern.permute.xlu0 0
    %56 = vperm.xlu0 %55, %v38
    %v57 = vpop.permute.xlu0 %56
    %60 = vset.pattern.permute.xlu0 0
    %61 = vperm.xlu0 %60, %v39
    %v62 = vpop.permute.xlu0 %61
    %65 = vset.pattern.permute.xlu0 0
    %66 = vperm.xlu0 %65, %v40
    %v67 = vpop.permute.xlu0 %66
    %70 = vset.pattern.permute.xlu0 0
    %71 = vperm.xlu0 %70, %v41
    %v72 = vpop.permute.xlu0 %71
    %75 = vset.pattern.permute.xlu0 0
    %76 = vperm.xlu0 %75, %v42
    %v77 = vpop.permute.xlu0 %76
    %80 = vset.pattern.permute.xlu0 0
    %81 = vperm.xlu0 %80, %v43
    %v82 = vpop.permute.xlu0 %81
    %vm84 = vcmask 130048
    %v86 = vsel %vm84, %v28, 0
    %v89 = vsel %vm84, %v29, 0
    %v92 = vsel %vm84, %v30, 0
    %v95 = vsel %vm84, %v31, 0
    %v98 = vsel %vm84, %v32, 0
    %v101 = vsel %vm84, %v33, 0
    %v104 = vsel %vm84, %v34, 0
    %v107 = vsel %vm84, %v35, 0
    %v110 = vsel %vm84, %v27, 0
    %112 = vmatprep.subr.mxu0 0.0
    %113 = vmatpush1.xpose.msra.mxu0 0.0
    %114 = vmatprep.subr.mxu0 0.0
    %115 = vmatpush1.xpose.msra.mxu0 0.0
    %116 = vmatprep.subr.mxu0 0.0
    %117 = vmatpush1.xpose.msra.mxu0 0.0
    %118 = vmatprep.subr.mxu0 0.0
    %119 = vmatpush1.xpose.msra.mxu0 0.0
    %120 = vmatprep.subr.mxu0 0.0
    %121 = vmatpush1.xpose.msra.mxu0 0.0
    %122 = vmatprep.subr.mxu0 0.0
    %123 = vmatpush1.xpose.msra.mxu0 0.0
    %124 = vmatprep.subr.mxu0 0.0
    %125 = vmatpush1.xpose.msra.mxu0 0.0
    %126 = vmatprep.subr.mxu0 0.0
    %127 = vmatpush1.xpose.msra.mxu0 0.0
    %128 = vmatprep.subr.mxu0 0.0
    %129 = vmatpush1.xpose.msra.mxu0 0.0
    %130 = vmatprep.subr.mxu0 0.0
    %131 = vmatpush1.xpose.msra.mxu0 0.0
    %132 = vmatprep.subr.mxu0 0.0
    %133 = vmatpush1.xpose.msra.mxu0 0.0
    %134 = vmatprep.subr.mxu0 0.0
    %135 = vmatpush1.xpose.msra.mxu0 0.0
    %136 = vmatprep.subr.mxu0 0.0
    %137 = vmatpush1.xpose.msra.mxu0 0.0
    %138 = vmatprep.subr.mxu0 0.0
    %139 = vmatpush1.xpose.msra.mxu0 0.0
    %140 = vmatprep.subr.mxu0 0.0
    %141 = vmatpush1.xpose.msra.mxu0 0.0
    %142 = vmatprep.subr.mxu0 0.0
    %143 = vmatpush1.xpose.msra.mxu0 %v110
    %144 = vmatprep.subr.mxu0 0.0
    %145 = vmatpush2.xpose.msra.mxu0 0.0
    %146 = vmatprep.subr.mxu0 0.0
    %147 = vmatpush2.xpose.msra.mxu0 0.0
    %148 = vmatprep.subr.mxu0 0.0
    %149 = vmatpush2.xpose.msra.mxu0 0.0
    %150 = vmatprep.subr.mxu0 0.0
    %151 = vmatpush2.xpose.msra.mxu0 0.0
    %152 = vmatprep.subr.mxu0 0.0
    %153 = vmatpush2.xpose.msra.mxu0 0.0
    %154 = vmatprep.subr.mxu0 0.0
    %155 = vmatpush2.xpose.msra.mxu0 0.0
    %156 = vmatprep.subr.mxu0 0.0
    %157 = vmatpush2.xpose.msra.mxu0 0.0
    %158 = vmatprep.subr.mxu0 0.0
    %159 = vmatpush2.xpose.msra.mxu0 0.0
    %160 = vmatprep.subr.mxu0 0.0
    %161 = vmatpush2.xpose.msra.mxu0 0.0
    %162 = vmatprep.subr.mxu0 0.0
    %163 = vmatpush2.xpose.msra.mxu0 0.0
    %164 = vmatprep.subr.mxu0 0.0
    %165 = vmatpush2.xpose.msra.mxu0 0.0
    %166 = vmatprep.subr.mxu0 0.0
    %167 = vmatpush2.xpose.msra.mxu0 0.0
    %168 = vmatprep.subr.mxu0 0.0
    %169 = vmatpush2.xpose.msra.mxu0 0.0
    %170 = vmatprep.subr.mxu0 0.0
    %171 = vmatpush2.xpose.msra.mxu0 0.0
    %172 = vmatprep.subr.mxu0 0.0
    %173 = vmatpush2.xpose.msra.mxu0 0.0
    %174 = vmatprep.subr.mxu0 0.0
    %175 = vmatpush2.xpose.msra.mxu0 0.0
    %176 = vmatprep.mubr.f32.mxu0 0.0
    %177 = vmatmul.mubr.f32.gmra.mxu0 %v86
    %v178 = vpop.f32.mrf.mxu0
    %v179 = vadd.f32 %v47, %v178
    %v180 = vpop.f32.mrf.mxu0
    %181 = vmatprep.mubr.f32.mxu0 0.0
    %182 = vmatmul.mubr.f32.gmra.mxu0 %v89
    %v183 = vpop.f32.mrf.mxu0
    %v184 = vadd.f32 %v52, %v183
    %v185 = vpop.f32.mrf.mxu0
    %186 = vmatprep.mubr.f32.mxu0 0.0
    %187 = vmatmul.mubr.f32.gmra.mxu0 %v92
    %v188 = vpop.f32.mrf.mxu0
    %v189 = vadd.f32 %v57, %v188
    %v190 = vpop.f32.mrf.mxu0
    %191 = vmatprep.mubr.f32.mxu0 0.0
    %192 = vmatmul.mubr.f32.gmra.mxu0 %v95
    %v193 = vpop.f32.mrf.mxu0
    %v194 = vadd.f32 %v62, %v193
    %v195 = vpop.f32.mrf.mxu0
    %196 = vmatprep.mubr.f32.mxu0 0.0
    %197 = vmatmul.mubr.f32.gmra.mxu0 %v98
    %v198 = vpop.f32.mrf.mxu0
    %v199 = vadd.f32 %v67, %v198
    %v200 = vpop.f32.mrf.mxu0
    %201 = vmatprep.mubr.f32.mxu0 0.0
    %202 = vmatmul.mubr.f32.gmra.mxu0 %v101
    %v203 = vpop.f32.mrf.mxu0
    %v204 = vadd.f32 %v72, %v203
    %v205 = vpop.f32.mrf.mxu0
    %206 = vmatprep.mubr.f32.mxu0 0.0
    %207 = vmatmul.mubr.f32.gmra.mxu0 %v104
    %v208 = vpop.f32.mrf.mxu0
    %v209 = vadd.f32 %v77, %v208
    %v210 = vpop.f32.mrf.mxu0
    %211 = vmatprep.mubr.f32.mxu0 0.0
    %212 = vmatmul.mubr.f32.gmra.mxu0 %v107
    %v213 = vpop.f32.mrf.mxu0
    %v214 = vadd.f32 %v82, %v213
    %v215 = vpop.f32.mrf.mxu0
    %216 = vdwg.mxu0
    %v217 = vmax.f32 %v179, 0.0
    %v218 = vmax.f32 %v184, 0.0
    %v219 = vmax.f32 %v189, 0.0
    %v220 = vmax.f32 %v194, 0.0
    %v221 = vmax.f32 %v199, 0.0
    %v222 = vmax.f32 %v204, 0.0
    %v223 = vmax.f32 %v209, 0.0
    %v224 = vmax.f32 %v214, 0.0
    %v225 = vld [vmem:[%s3] sm:$0xff]
    %v226 = vld [vmem:[%s3 + $0x8] sm:$0xff]
    %v227 = vld [vmem:[%s3 + $0x10] sm:$0xff]
    %v228 = vld [vmem:[%s3 + $0x18] sm:$0xff]
    %v229 = vld [vmem:[%s3 + $0x20] sm:$0xff]
    %v230 = vld [vmem:[%s3 + $0x28] sm:$0xff]
    %v231 = vld [vmem:[%s3 + $0x30] sm:$0xff]
    %v232 = vld [vmem:[%s3 + $0x38] sm:$0xff]
    %v233 = vld [vmem:[%s4] sm:$0xff]
    %v234 = vld [vmem:[%s4 + $0x8] sm:$0xff]
    %v235 = vld [vmem:[%s4 + $0x10] sm:$0xff]
    %v236 = vld [vmem:[%s4 + $0x18] sm:$0xff]
    %v237 = vld [vmem:[%s4 + $0x20] sm:$0xff]
    %v238 = vld [vmem:[%s4 + $0x28] sm:$0xff]
    %v239 = vld [vmem:[%s4 + $0x30] sm:$0xff]
    %v240 = vld [vmem:[%s4 + $0x38] sm:$0xff]
    %242 = vset.pattern.permute.xlu0 0
    %243 = vperm.xlu0 %242, %v233
    %v244 = vpop.permute.xlu0 %243
    %247 = vset.pattern.permute.xlu0 0
    %248 = vperm.xlu0 %247, %v234
    %v249 = vpop.permute.xlu0 %248
    %252 = vset.pattern.permute.xlu0 0
    %253 = vperm.xlu0 %252, %v235
    %v254 = vpop.permute.xlu0 %253
    %257 = vset.pattern.permute.xlu0 0
    %258 = vperm.xlu0 %257, %v236
    %v259 = vpop.permute.xlu0 %258
    %262 = vset.pattern.permute.xlu0 0
    %263 = vperm.xlu0 %262, %v237
    %v264 = vpop.permute.xlu0 %263
    %267 = vset.pattern.permute.xlu0 0
    %268 = vperm.xlu0 %267, %v238
    %v269 = vpop.permute.xlu0 %268
    %272 = vset.pattern.permute.xlu0 0
    %273 = vperm.xlu0 %272, %v239
    %v274 = vpop.permute.xlu0 %273
    %277 = vset.pattern.permute.xlu0 0
    %278 = vperm.xlu0 %277, %v240
    %v279 = vpop.permute.xlu0 %278
    %vm281 = vcmask 523264
    %v283 = vsel %vm281, %v225, 0
    %v286 = vsel %vm281, %v226, 0
    %v289 = vsel %vm281, %v227, 0
    %v292 = vsel %vm281, %v228, 0
    %v295 = vsel %vm281, %v229, 0
    %v298 = vsel %vm281, %v230, 0
    %v301 = vsel %vm281, %v231, 0
    %v304 = vsel %vm281, %v232, 0
    %306 = vmatprep.subr.mxu0 0.0
    %307 = vmatpush1.msra.mxu0 0.0
    %308 = vmatprep.subr.mxu0 0.0
    %309 = vmatpush1.msra.mxu0 0.0
    %310 = vmatprep.subr.mxu0 0.0
    %311 = vmatpush1.msra.mxu0 0.0
    %312 = vmatprep.subr.mxu0 0.0
    %313 = vmatpush1.msra.mxu0 0.0
    %314 = vmatprep.subr.mxu0 0.0
    %315 = vmatpush1.msra.mxu0 0.0
    %316 = vmatprep.subr.mxu0 0.0
    %317 = vmatpush1.msra.mxu0 0.0
    %318 = vmatprep.subr.mxu0 0.0
    %319 = vmatpush1.msra.mxu0 0.0
    %320 = vmatprep.subr.mxu0 0.0
    %321 = vmatpush1.msra.mxu0 0.0
    %322 = vmatprep.subr.mxu0 0.0
    %323 = vmatpush1.msra.mxu0 %v224
    %324 = vmatprep.subr.mxu0 0.0
    %325 = vmatpush1.msra.mxu0 %v223
    %326 = vmatprep.subr.mxu0 0.0
    %327 = vmatpush1.msra.mxu0 %v222
    %328 = vmatprep.subr.mxu0 0.0
    %329 = vmatpush1.msra.mxu0 %v221
    %330 = vmatprep.subr.mxu0 0.0
    %331 = vmatpush1.msra.mxu0 %v220
    %332 = vmatprep.subr.mxu0 0.0
    %333 = vmatpush1.msra.mxu0 %v219
    %334 = vmatprep.subr.mxu0 0.0
    %335 = vmatpush1.msra.mxu0 %v218
    %336 = vmatprep.subr.mxu0 0.0
    %337 = vmatpush1.msra.mxu0 %v217
    %338 = vmatprep.subr.mxu0 0.0
    %339 = vmatpush2.msra.mxu0 0.0
    %340 = vmatprep.subr.mxu0 0.0
    %341 = vmatpush2.msra.mxu0 0.0
    %342 = vmatprep.subr.mxu0 0.0
    %343 = vmatpush2.msra.mxu0 0.0
    %344 = vmatprep.subr.mxu0 0.0
    %345 = vmatpush2.msra.mxu0 0.0
    %346 = vmatprep.subr.mxu0 0.0
    %347 = vmatpush2.msra.mxu0 0.0
    %348 = vmatprep.subr.mxu0 0.0
    %349 = vmatpush2.msra.mxu0 0.0
    %350 = vmatprep.subr.mxu0 0.0
    %351 = vmatpush2.msra.mxu0 0.0
    %352 = vmatprep.subr.mxu0 0.0
    %353 = vmatpush2.msra.mxu0 0.0
    %354 = vmatprep.subr.mxu0 0.0
    %355 = vmatpush2.msra.mxu0 0.0
    %356 = vmatprep.subr.mxu0 0.0
    %357 = vmatpush2.msra.mxu0 0.0
    %358 = vmatprep.subr.mxu0 0.0
    %359 = vmatpush2.msra.mxu0 0.0
    %360 = vmatprep.subr.mxu0 0.0
    %361 = vmatpush2.msra.mxu0 0.0
    %362 = vmatprep.subr.mxu0 0.0
    %363 = vmatpush2.msra.mxu0 0.0
    %364 = vmatprep.subr.mxu0 0.0
    %365 = vmatpush2.msra.mxu0 0.0
    %366 = vmatprep.subr.mxu0 0.0
    %367 = vmatpush2.msra.mxu0 0.0
    %368 = vmatprep.subr.mxu0 0.0
    %369 = vmatpush2.msra.mxu0 0.0
    %370 = vmatprep.mubr.f32.mxu0 0.0
    %371 = vmatmul.mubr.f32.gmra.mxu0 %v283
    %v372 = vpop.f32.mrf.mxu0
    %v373 = vadd.f32 %v244, %v372
    %v374 = vpop.f32.mrf.mxu0
    %375 = vmatprep.mubr.f32.mxu0 0.0
    %376 = vmatmul.mubr.f32.gmra.mxu0 %v286
    %v377 = vpop.f32.mrf.mxu0
    %v378 = vadd.f32 %v249, %v377
    %v379 = vpop.f32.mrf.mxu0
    %380 = vmatprep.mubr.f32.mxu0 0.0
    %381 = vmatmul.mubr.f32.gmra.mxu0 %v289
    %v382 = vpop.f32.mrf.mxu0
    %v383 = vadd.f32 %v254, %v382
    %v384 = vpop.f32.mrf.mxu0
    %385 = vmatprep.mubr.f32.mxu0 0.0
    %386 = vmatmul.mubr.f32.gmra.mxu0 %v292
    %v387 = vpop.f32.mrf.mxu0
    %v388 = vadd.f32 %v259, %v387
    %v389 = vpop.f32.mrf.mxu0
    %390 = vmatprep.mubr.f32.mxu0 0.0
    %391 = vmatmul.mubr.f32.gmra.mxu0 %v295
    %v392 = vpop.f32.mrf.mxu0
    %v393 = vadd.f32 %v264, %v392
    %v394 = vpop.f32.mrf.mxu0
    %395 = vmatprep.mubr.f32.mxu0 0.0
    %396 = vmatmul.mubr.f32.gmra.mxu0 %v298
    %v397 = vpop.f32.mrf.mxu0
    %v398 = vadd.f32 %v269, %v397
    %v399 = vpop.f32.mrf.mxu0
    %400 = vmatprep.mubr.f32.mxu0 0.0
    %401 = vmatmul.mubr.f32.gmra.mxu0 %v301
    %v402 = vpop.f32.mrf.mxu0
    %v403 = vadd.f32 %v274, %v402
    %v404 = vpop.f32.mrf.mxu0
    %405 = vmatprep.mubr.f32.mxu0 0.0
    %406 = vmatmul.mubr.f32.gmra.mxu0 %v304
    %v407 = vpop.f32.mrf.mxu0
    %v408 = vadd.f32 %v279, %v407
    %v409 = vpop.f32.mrf.mxu0
    %410 = vdwg.mxu0
    %v411 = vmax.f32 %v373, 0.0
    %v412 = vmax.f32 %v378, 0.0
    %v413 = vmax.f32 %v383, 0.0
    %v414 = vmax.f32 %v388, 0.0
    %v415 = vmax.f32 %v393, 0.0
    %v416 = vmax.f32 %v398, 0.0
    %v417 = vmax.f32 %v403, 0.0
    %v418 = vmax.f32 %v408, 0.0
    %v419 = vld [vmem:[%s5] sm:$0xf]
    %v420 = vld [vmem:[%s6] sm:$0xf]
    %422 = vset.pattern.permute.xlu0 0
    %423 = vperm.xlu0 %422, %v420
    %v424 = vpop.permute.xlu0 %423
    %v427 = vsel %vm281, %v419, 0
    %429 = vmatprep.subr.mxu0 0.0
    %430 = vmatpush1.msra.mxu0 0.0
    %431 = vmatprep.subr.mxu0 0.0
    %432 = vmatpush1.msra.mxu0 0.0
    %433 = vmatprep.subr.mxu0 0.0
    %434 = vmatpush1.msra.mxu0 0.0
    %435 = vmatprep.subr.mxu0 0.0
    %436 = vmatpush1.msra.mxu0 0.0
    %437 = vmatprep.subr.mxu0 0.0
    %438 = vmatpush1.msra.mxu0 0.0
    %439 = vmatprep.subr.mxu0 0.0
    %440 = vmatpush1.msra.mxu0 0.0
    %441 = vmatprep.subr.mxu0 0.0
    %442 = vmatpush1.msra.mxu0 0.0
    %443 = vmatprep.subr.mxu0 0.0
    %444 = vmatpush1.msra.mxu0 0.0
    %445 = vmatprep.subr.mxu0 0.0
    %446 = vmatpush1.msra.mxu0 %v418
    %447 = vmatprep.subr.mxu0 0.0
    %448 = vmatpush1.msra.mxu0 %v417
    %449 = vmatprep.subr.mxu0 0.0
    %450 = vmatpush1.msra.mxu0 %v416
    %451 = vmatprep.subr.mxu0 0.0
    %452 = vmatpush1.msra.mxu0 %v415
    %453 = vmatprep.subr.mxu0 0.0
    %454 = vmatpush1.msra.mxu0 %v414
    %455 = vmatprep.subr.mxu0 0.0
    %456 = vmatpush1.msra.mxu0 %v413
    %457 = vmatprep.subr.mxu0 0.0
    %458 = vmatpush1.msra.mxu0 %v412
    %459 = vmatprep.subr.mxu0 0.0
    %460 = vmatpush1.msra.mxu0 %v411
    %461 = vmatprep.subr.mxu0 0.0
    %462 = vmatpush2.msra.mxu0 0.0
    %463 = vmatprep.subr.mxu0 0.0
    %464 = vmatpush2.msra.mxu0 0.0
    %465 = vmatprep.subr.mxu0 0.0
    %466 = vmatpush2.msra.mxu0 0.0
    %467 = vmatprep.subr.mxu0 0.0
    %468 = vmatpush2.msra.mxu0 0.0
    %469 = vmatprep.subr.mxu0 0.0
    %470 = vmatpush2.msra.mxu0 0.0
    %471 = vmatprep.subr.mxu0 0.0
    %472 = vmatpush2.msra.mxu0 0.0
    %473 = vmatprep.subr.mxu0 0.0
    %474 = vmatpush2.msra.mxu0 0.0
    %475 = vmatprep.subr.mxu0 0.0
    %476 = vmatpush2.msra.mxu0 0.0
    %477 = vmatprep.subr.mxu0 0.0
    %478 = vmatpush2.msra.mxu0 0.0
    %479 = vmatprep.subr.mxu0 0.0
    %480 = vmatpush2.msra.mxu0 0.0
    %481 = vmatprep.subr.mxu0 0.0
    %482 = vmatpush2.msra.mxu0 0.0
    %483 = vmatprep.subr.mxu0 0.0
    %484 = vmatpush2.msra.mxu0 0.0
    %485 = vmatprep.subr.mxu0 0.0
    %486 = vmatpush2.msra.mxu0 0.0
    %487 = vmatprep.subr.mxu0 0.0
    %488 = vmatpush2.msra.mxu0 0.0
    %489 = vmatprep.subr.mxu0 0.0
    %490 = vmatpush2.msra.mxu0 0.0
    %491 = vmatprep.subr.mxu0 0.0
    %492 = vmatpush2.msra.mxu0 0.0
    %493 = vmatprep.mubr.f32.mxu0 0.0
    %494 = vmatmul.mubr.f32.gmra.mxu0 %v427
    %v495 = vpop.f32.mrf.mxu0
    %v496 = vadd.f32 %v424, %v495
    %v497 = vpop.f32.mrf.mxu0
    %498 = vdwg.mxu0
    %v499 = vtanh.pop %v496
    %vm500 = vcmask 60416
    %501 = vst.msk [vmem:[#allocation2] sm:$0xf] %vm500, %v499
    // Predicated region
    $region30: #{tpu_custom_call.1} parent=1 // pred_check
      _
    $region31: #{tpu_custom_call.1} parent=1 // pred_check_branch
      %503 = sbr.rel (0) target = $region33
    $region32: #{tpu_custom_call.1} parent=1 // pred_region
      %s505 = ssub.s32 64, 64
      %506 = vsyncadd [#allocation3], %s505
      %s508 = sshll.u32 [#allocation2], 4
      %s509 = int_to_ptr.vmem [resolvable:$true] %s508
      %511 = dma.vmem_to_hbm [thread:$0]  %s509, 64, %s7, [#allocation3]
    $region33: #{tpu_custom_call.1} parent=1 // pred_fallthru
      _
    // Predicated region
    $region34: #{tpu_custom_call.1} parent=1 // pred_check
      _
    $region35: #{tpu_custom_call.1} parent=1 // pred_check_branch
      %513 = sbr.rel (0) target = $region37
    $region36: #{tpu_custom_call.1} parent=1 // pred_region
      %514 = dma.done [#allocation3], 64
    $region37: #{tpu_custom_call.1} parent=1 // pred_fallthru
      _
    %515 = vsyncpa [#allocation3], 1

</llo_original>
